<compile_context>
chip_gen: v7x
topology: tpu7x:2x2x1
jax: 0.10.0
libtpu: 0.0.40
codegen_flags: <defaults>
</compile_context>

<pallas_src>
import functools
import math

import jax
import jax.numpy as jnp
import numpy as np
from jax.experimental import pallas as pl
from jax.experimental.pallas import tpu as pltpu

# CompilerParams was called TPUCompilerParams in older jax releases; accept either.
_CompilerParams = getattr(pltpu, "CompilerParams", None) or getattr(
    pltpu, "TPUCompilerParams"
)


# -----------------------------------------------------------------------------
# In-kernel hash PRNG (portable: lowers on real TPUs and in CPU interpret mode)
# -----------------------------------------------------------------------------
def _mix32(x):
    """splitmix32 / murmur3-style 32-bit finalizer. Cheap VPU ops, good avalanche."""
    x = x ^ (x >> 16)
    x = x * jnp.uint32(0x7FEB352D)
    x = x ^ (x >> 15)
    x = x * jnp.uint32(0x846CA68B)
    x = x ^ (x >> 16)
    return x


# -----------------------------------------------------------------------------
# Kernels
# -----------------------------------------------------------------------------
def _pe_add_kernel(x_ref, pe_ref, o_ref):
    """o = x + pe (pe broadcast over batch when the block is 3-D)."""
    x = x_ref[...]
    pe = pe_ref[...].astype(x.dtype)
    if x.ndim == 3:                      # (TS, B, D) + (TS, D)
        pe = pe[:, None, :]
    o_ref[...] = x + pe


def _pe_add_dropout_kernel(seed_ref, x_ref, pe_ref, o_ref, *, p, block_rows):
    """o = inverted_dropout(x + pe, p).

    The mask comes from a counter-based hash keyed on (seed, global element index),
    so the random stream is unique per element regardless of grid tiling.
    """
    x = x_ref[...].astype(jnp.float32)
    pe = pe_ref[...].astype(jnp.float32)
    if x.ndim == 3:
        pe = pe[:, None, :]
    y = x + pe                           # math in f32; cast once at the end

    shp = y.shape
    row = jax.lax.broadcasted_iota(jnp.uint32, shp, 0)
    if y.ndim == 3:
        col = (jax.lax.broadcasted_iota(jnp.uint32, shp, 1) * jnp.uint32(shp[2])
               + jax.lax.broadcasted_iota(jnp.uint32, shp, 2))
        row_width = shp[1] * shp[2]
    else:
        col = jax.lax.broadcasted_iota(jnp.uint32, shp, 1)
        row_width = shp[1]
    row_start = (pl.program_id(0) * block_rows).astype(jnp.uint32)
    elem = (row + row_start) * jnp.uint32(row_width) + col    # global element id

    seed_u = seed_ref[0].astype(jnp.uint32)
    stream = seed_u * jnp.uint32(0x9E3779B9) + jnp.uint32(0x7F4A7C15)
    bits = _mix32(elem ^ stream)

    # Compare on the top 24 random bits as signed ints (nonnegative, simple compare).
    r = (bits >> 8).astype(jnp.int32)
    threshold = jnp.int32(min(int(round(p * float(1 << 24))), (1 << 24) - 1))
    keep = r >= threshold                                      # P(keep) = 1 - p
    scale = jnp.float32(1.0 / (1.0 - p))
    o_ref[...] = (y * jnp.where(keep, scale, jnp.float32(0.0))).astype(o_ref.dtype)


# -----------------------------------------------------------------------------
# Parameter (buffer) setup — deterministic, mirrors the PyTorch __init__
# -----------------------------------------------------------------------------
def make_positional_encoding(d_model, max_len=5000, dtype=jnp.float32):
    position = jnp.arange(max_len, dtype=jnp.float32)[:, None]            # (max_len, 1)
    div_term = jnp.exp(
        jnp.arange(0, d_model, 2, dtype=jnp.float32) * (-math.log(10000.0) / d_model)
    )                                                                     # (d_model//2,)
    ang = position * div_term                                             # (max_len, d//2)
    pe = jnp.zeros((max_len, d_model), jnp.float32)
    pe = pe.at[:, 0::2].set(jnp.sin(ang))
    pe = pe.at[:, 1::2].set(jnp.cos(ang))
    return pe.astype(dtype)                                               # (max_len, d_model)


# -----------------------------------------------------------------------------
# Wrapper
# -----------------------------------------------------------------------------
def _choose_block_rows(n_rows, row_bytes, target_bytes=4 * 1024 * 1024):
    """Rows per grid step: multiple of 8 (layout-legal) sized for ~target_bytes per x
    block, so per-step DMA amortizes the ~0.35us grid overhead while the double-buffered
    working set (~4x block + pe) stays well under VMEM on v5e/v6e/v7x."""
    if n_rows * row_bytes <= target_bytes:
        return int(n_rows)                 # single block; full dims are always legal
    ts = max(1, target_bytes // max(row_bytes, 1))
    ts = max(8, (ts // 8) * 8)
    return int(min(ts, n_rows))


def positional_encoder(x, pe, *, dropout_p=0.1, training=False, seed=0):
    """x: (S, B, D); pe: (max_len, D) sin/cos table. Returns dropout(x + pe[:S])."""
    S, B, D = x.shape
    if training and dropout_p >= 1.0:      # nn.Dropout(p=1) zeroes everything
        return jnp.zeros_like(x)

    itemsize = jnp.dtype(x.dtype).itemsize
    row_bytes = B * D * itemsize
    ts = _choose_block_rows(S, row_bytes)
    grid = (pl.cdiv(S, ts),)
    # TODO(synk): also tile over the batch axis if a single (8, B, D) slab ever exceeds
    # the VMEM budget (huge B*D); not needed for typical transformer shapes.

    fold = (D % 128) != 0
    if fold:
        # Lane-dense layout: fold batch into the lane axis so stores are not masked.
        x_op = x.reshape(S, B * D)
        pe_op = jnp.tile(pe[:S], (1, B))                       # (S, B*D); pe is tiny
        block = (ts, B * D)
        x_idx = lambda i, *_: (i, 0)
        pe_spec = pl.BlockSpec(block, x_idx)
        out_struct = jax.ShapeDtypeStruct((S, B * D), x.dtype)
    else:
        x_op = x
        # Select pe[:S] through the BlockSpec (no wrapper-side slice) whenever the block
        # stays (8, ...)-legal against the full buffer.
        pe_op = pe if ts % 8 == 0 else pe[:S]
        block = (ts, B, D)
        x_idx = lambda i, *_: (i, 0, 0)
        pe_spec = pl.BlockSpec((ts, D), lambda i, *_: (i, 0))
        out_struct = jax.ShapeDtypeStruct((S, B, D), x.dtype)

    x_spec = pl.BlockSpec(block, x_idx)
    out_spec = pl.BlockSpec(block, x_idx)

    compiler_params = _CompilerParams(
        dimension_semantics=("parallel",),       # elementwise: shard grid across TCs (v7x)
        vmem_limit_bytes=48 * 1024 * 1024,       # above default scoped limit, safe on v7x
    )

    if not training:
        out = pl.pallas_call(
            _pe_add_kernel,
            out_shape=out_struct,
            grid_spec=pltpu.PrefetchScalarGridSpec(
                num_scalar_prefetch=0,
                grid=grid,
                in_specs=[x_spec, pe_spec],
                out_specs=out_spec,
            ),
            compiler_params=compiler_params,
        )(x_op, pe_op)
    else:
        kernel = functools.partial(
            _pe_add_dropout_kernel, p=float(dropout_p), block_rows=ts
        )
        seed_arr = jnp.asarray([seed], dtype=jnp.int32)
        out = pl.pallas_call(
            kernel,
            out_shape=out_struct,
            grid_spec=pltpu.PrefetchScalarGridSpec(
                num_scalar_prefetch=1,
                grid=grid,
                in_specs=[x_spec, pe_spec],
                out_specs=out_spec,
            ),
            compiler_params=compiler_params,
        )(seed_arr, x_op, pe_op)

    return out.reshape(S, B, D) if fold else out


# -----------------------------------------------------------------------------
# Demo / self-check
# -----------------------------------------------------------------------------
if __name__ == "__main__":
    S, B, D = 8, 2, 32        # seq_len, batch, d_model
    MAX_LEN = 64
    P = 0.1

    key = jax.random.PRNGKey(0)
    x = jax.random.normal(key, (S, B, D), dtype=jnp.float32)
    pe = make_positional_encoding(D, max_len=MAX_LEN)

    # Eval mode (dropout == identity): compare against the pure-JAX reference.
    out = positional_encoder(x, pe, dropout_p=P, training=False)
    out = jax.block_until_ready(out)
    ref = x + pe[:S][:, None, :]
    np.testing.assert_allclose(np.asarray(out), np.asarray(ref), rtol=1e-6, atol=1e-6)

    # Training mode (inverted dropout): every element is either 0 or ref/(1-p).
    out_tr = positional_encoder(x, pe, dropout_p=P, training=True, seed=0)
    out_tr = jax.block_until_ready(out_tr)
    assert out_tr.shape == (S, B, D)
    o = np.asarray(out_tr)
    r = np.asarray(ref)
    kept = o != 0.0
    np.testing.assert_allclose(o[kept], (r / (1.0 - P))[kept], rtol=1e-5, atol=1e-5)
    assert 0 < kept.sum() < o.size        # some elements kept, some dropped

    print("KERNEL_OK")
</pallas_src>

<mosaic_0001>
module attributes {stable_mosaic.version = 11 : i64} {
  func.func @_pe_add_kernel(%arg0: i32, %arg1: memref<8x64xf32, #tpu.memory_space<vmem>>, %arg2: memref<8x64xf32, #tpu.memory_space<vmem>>, %arg3: memref<8x64xf32, #tpu.memory_space<vmem>>) attributes {dimension_semantics = [#tpu.dimension_semantics<parallel>], iteration_bounds = array<i64: 1>, scalar_prefetch = 0 : i64, scratch_operands = 0 : i64, tpu.core_type = #tpu.core_type<tc>, window_params = [{transform_indices = @transform_0, window_bounds = array<i64: 8, 64>}, {transform_indices = @transform_1, window_bounds = array<i64: 8, 64>}, {transform_indices = @transform_2, window_bounds = array<i64: 8, 64>}]} {
    %c0 = arith.constant 0 : index
    %c0_0 = arith.constant 0 : index
    %0 = vector.load %arg1[%c0, %c0_0] : memref<8x64xf32, #tpu.memory_space<vmem>>, vector<8x64xf32>
    %c0_1 = arith.constant 0 : index
    %c0_2 = arith.constant 0 : index
    %1 = vector.load %arg2[%c0_1, %c0_2] : memref<8x64xf32, #tpu.memory_space<vmem>>, vector<8x64xf32>
    %2 = arith.addf %0, %1 : vector<8x64xf32>
    %c0_3 = arith.constant 0 : index
    %c0_4 = arith.constant 0 : index
    %3 = vector.load %arg3[%c0_3, %c0_4] : memref<8x64xf32, #tpu.memory_space<vmem>>, vector<8x64xf32>
    tpu.vector_store %arg3[%c0_3, %c0_4], %2 {strides = array<i32>} : memref<8x64xf32, #tpu.memory_space<vmem>>, vector<8x64xf32>,
    return
  }
  func.func @transform_0(%arg0: i32) -> (i32, i32) {
    %c0_i32 = arith.constant 0 : i32
    %c0_i32_0 = arith.constant 0 : i32
    return %arg0, %c0_i32 : i32, i32
  }
  func.func @transform_1(%arg0: i32) -> (i32, i32) {
    %c0_i32 = arith.constant 0 : i32
    %c0_i32_0 = arith.constant 0 : i32
    return %arg0, %c0_i32 : i32, i32
  }
  func.func @transform_2(%arg0: i32) -> (i32, i32) {
    %c0_i32 = arith.constant 0 : i32
    %c0_i32_0 = arith.constant 0 : i32
    return %arg0, %c0_i32 : i32, i32
  }
}

</mosaic_0001>

<llo_original>
// kernel: tpu_custom_call.1
$region0: #{tpu_custom_call.1}
  #allocation0 [shape = 'u32[]', space=smem, size = 0x4, offset = 0x4, fixed_abs, tag = 'smem constant byte address 0x4 - core index']
  #allocation1 [shape = 'u32[144,128]{1,0:T(1,128)}', space=vmem, size = 0x12000, scoped, tag = 'internal scratch']
  %s0 = inlined_call_operand.hbm [shape: f32[8,64], index: 0, kind: input, shape index: {}]
  %s1 = inlined_call_operand.hbm [shape: f32[8,64], index: 1, kind: input, shape index: {}]
  %s2 = inlined_call_operand.hbm [shape: f32[8,64], index: 2, kind: output, shape index: {}]
  %s3 = sld [smem:[#allocation0]]
  $region26: #{tpu_custom_call.1} parent=0
    _
  %s5 = ssub.s32 1, %s3
  %s6 = scalar_select 0, %s5, %s3
  $region1: #{tpu_custom_call.1} parent=0
    #allocation2 [shape = 'u8[4096]{0}', space=vmem, size = 0x1000, scoped, tag = 'input window, operand 0, single buffered']
    #allocation3 [shape = 's32[1]{0}', space=sflag, size = 0x4, scoped, tag = 'scoped memory for tpu_custom_call.1']
    #allocation4 [shape = 's32[1]{0}', space=sflag, size = 0x4, scoped, tag = 'scoped memory for tpu_custom_call.1']
    #allocation5 [shape = 'u8[4096]{0}', space=vmem, size = 0x1000, scoped, tag = 'input window, operand 1, single buffered']
    #allocation6 [shape = 's32[1]{0}', space=sflag, size = 0x4, scoped, tag = 'scoped memory for tpu_custom_call.1']
    #allocation7 [shape = 'u8[4096]{0}', space=vmem, size = 0x1000, scoped, tag = 'output window, operand 0, single buffered']
    %7 = vsyncpa [#allocation3], 0
    %8 = vsyncpa [#allocation6], 0
    %9 = vsyncpa [#allocation4], 0
    // Predicated region
    $region2: #{tpu_custom_call.1} parent=1 // pred_check
      _
    $region3: #{tpu_custom_call.1} parent=1 // pred_check_branch
      %11 = sbr.rel (0) target = $region5
    $region4: #{tpu_custom_call.1} parent=1 // pred_region
      %s13 = ssub.s32 128, 128
      %14 = vsyncadd [#allocation3], %s13
      %s16 = sshll.u32 [#allocation2], 4
      %s17 = int_to_ptr.vmem [resolvable:$true] %s16
      %19 = dma.hbm_to_vmem [thread:$0]  %s0, 128, %s17, [#allocation3]
    $region5: #{tpu_custom_call.1} parent=1 // pred_fallthru
      _
    // Predicated region
    $region6: #{tpu_custom_call.1} parent=1 // pred_check
      _
    $region7: #{tpu_custom_call.1} parent=1 // pred_check_branch
      %21 = sbr.rel (0) target = $region9
    $region8: #{tpu_custom_call.1} parent=1 // pred_region
      %s23 = ssub.s32 128, 128
      %24 = vsyncadd [#allocation6], %s23
      %s26 = sshll.u32 [#allocation5], 4
      %s27 = int_to_ptr.vmem [resolvable:$true] %s26
      %29 = dma.hbm_to_vmem [thread:$0]  %s1, 128, %s27, [#allocation6]
    $region9: #{tpu_custom_call.1} parent=1 // pred_fallthru
      _
    // Predicated region
    $region10: #{tpu_custom_call.1} parent=1 // pred_check
      _
    $region11: #{tpu_custom_call.1} parent=1 // pred_check_branch
      %31 = sbr.rel (0) target = $region13
    $region12: #{tpu_custom_call.1} parent=1 // pred_region
      %32 = dma.done [#allocation3], 128
    $region13: #{tpu_custom_call.1} parent=1 // pred_fallthru
      _
    // Predicated region
    $region14: #{tpu_custom_call.1} parent=1 // pred_check
      _
    $region15: #{tpu_custom_call.1} parent=1 // pred_check_branch
      %34 = sbr.rel (0) target = $region17
    $region16: #{tpu_custom_call.1} parent=1 // pred_region
      %35 = dma.done [#allocation6], 128
    $region17: #{tpu_custom_call.1} parent=1 // pred_fallthru
      _
    %v36 = vld [vmem:[#allocation2] sm:$0xff]
    %v37 = vld [vmem:[#allocation5] sm:$0xff]
    %v38 = vadd.f32 %v36, %v37
    %vm39 = vcmask 523264
    %40 = vst.msk [vmem:[#allocation7] sm:$0xff] %vm39, %v38
    // Predicated region
    $region18: #{tpu_custom_call.1} parent=1 // pred_check
      _
    $region19: #{tpu_custom_call.1} parent=1 // pred_check_branch
      %42 = sbr.rel (0) target = $region21
    $region20: #{tpu_custom_call.1} parent=1 // pred_region
      %s44 = ssub.s32 128, 128
      %45 = vsyncadd [#allocation4], %s44
      %s47 = sshll.u32 [#allocation7], 4
      %s48 = int_to_ptr.vmem [resolvable:$true] %s47
      %50 = dma.vmem_to_hbm [thread:$0]  %s48, 128, %s2, [#allocation4]
    $region21: #{tpu_custom_call.1} parent=1 // pred_fallthru
      _
    // Predicated region
    $region22: #{tpu_custom_call.1} parent=1 // pred_check
      _
    $region23: #{tpu_custom_call.1} parent=1 // pred_check_branch
      %52 = sbr.rel (0) target = $region25
    $region24: #{tpu_custom_call.1} parent=1 // pred_region
      %53 = dma.done [#allocation4], 128
    $region25: #{tpu_custom_call.1} parent=1 // pred_fallthru
      _
    %54 = vsyncpa [#allocation3], 1
    %55 = vsyncpa [#allocation6], 1
    %56 = vsyncpa [#allocation4], 1

</llo_original>
